<compile_context>
chip_gen: v7x
topology: tpu7x:2x2x1
jax: 0.10.0
libtpu: 0.0.40
codegen_flags: <defaults>
</compile_context>

<pallas_src>
import functools

import jax
import jax.numpy as jnp
from jax.experimental import pallas as pl
from jax.experimental.pallas import tpu as pltpu

LANE = 128
SUBLANE = 8


def _round_up(n, m):
    return (n + m - 1) // m * m


def _epilogue_dtype():
    """bf16 bias/tanh on v6e/v7x (bf16 VPU/EUP); f32 elsewhere (e.g. v5e)."""
    try:
        kind = jax.devices()[0].device_kind.lower()
    except Exception:
        kind = ""
    if "v6" in kind or "v7" in kind:
        return jnp.bfloat16
    return jnp.float32


def mlp_kernel(x_ref,
               w1_ref, b1_ref,
               w2_ref, b2_ref,
               w3_ref, b3_ref,
               w4_ref, b4_ref,
               o_ref, *, act_dtype):
    # 3 bf16 MXU matmuls with f32 accumulation; bias + tanh on VPU/EUP.
    x = x_ref[...].astype(jnp.bfloat16)
    h = jnp.dot(x, w1_ref[...], preferred_element_type=jnp.float32) + b1_ref[...]
    h = jnp.tanh(h.astype(act_dtype)).astype(jnp.bfloat16)
    h = jnp.dot(h, w2_ref[...], preferred_element_type=jnp.float32) + b2_ref[...]
    h = jnp.tanh(h.astype(act_dtype)).astype(jnp.bfloat16)
    h = jnp.dot(h, w3_ref[...], preferred_element_type=jnp.float32) + b3_ref[...]
    h = jnp.tanh(h.astype(act_dtype)).astype(jnp.bfloat16)
    # Final layer has a single real output column: broadcast-multiply + lane
    # reduce (XLU slot is idle) instead of an MXU pass + 128-wide writeback.
    y = jnp.sum(h.astype(jnp.float32) * w4_ref[...].astype(jnp.float32),
                axis=-1, keepdims=True) + b4_ref[...]
    o_ref[...] = y.astype(o_ref.dtype)  # compact (TB, 1) store


def prepare_params(params):
    """One-time pad + bf16 cast of weights/biases (hoisted out of hot path).

    params: list of 4 (W [in, out] f32, b [1, out] f32) tuples, stored [in, out]
            (transpose of PyTorch's [out, in]) so the kernel computes x @ W + b.
    Returns a flat list of padded arrays ready for nonlinear_network.
    """
    flat = []
    for li, (w, b) in enumerate(params[:3]):
        in_d = w.shape[0] if li == 0 else _round_up(w.shape[0], LANE)
        out_d = _round_up(w.shape[1], LANE)
        w_p = jnp.zeros((in_d, out_d), jnp.bfloat16)
        w_p = w_p.at[:w.shape[0], :w.shape[1]].set(w.astype(jnp.bfloat16))
        b_p = jnp.zeros((1, out_d), jnp.float32)
        b_p = b_p.at[:, :b.shape[1]].set(b.astype(jnp.float32))
        flat += [w_p, b_p]
    # Layer 4: keep only its single real output column, as a lane row-vector.
    w4, b4 = params[3]
    in_d = _round_up(w4.shape[0], LANE)
    w4_row = jnp.zeros((1, in_d), jnp.bfloat16)
    w4_row = w4_row.at[0, :w4.shape[0]].set(w4[:, 0].astype(jnp.bfloat16))
    b4_s = b4.reshape(1, 1).astype(jnp.float32)
    flat += [w4_row, b4_s]
    return flat


def nonlinear_network(x, prepared, *, batch_tile=512):
    """Forward pass of NonLinearNetwork.

    x: [B, D] float32; prepared: output of prepare_params().
    Returns [B, 1] float32.
    """
    B, D = x.shape
    B8 = _round_up(B, SUBLANE)
    # Batch tile: as big as batch_tile allows (step-overhead/HBM bound regime),
    # multiple of 8, but capped so the grid keeps >= 2 steps when the batch
    # allows (gives both v7x TensorCores work; no-op on single-TC parts).
    half = max(SUBLANE, _round_up(B8 // 2, SUBLANE))
    TB = max(SUBLANE, min(batch_tile, half))
    B_pad = _round_up(B, TB)
    if B_pad != B:
        x = jnp.pad(x, ((0, B_pad - B), (0, 0)))

    # x streams over the batch grid; weights/biases use a constant block index
    # so they are DMA'd once and stay VMEM-resident across grid steps.
    in_specs = [pl.BlockSpec((TB, D), lambda i: (i, 0))]
    for arr in prepared:
        in_specs.append(pl.BlockSpec(arr.shape, lambda i: (0, 0)))

    out_p = pl.pallas_call(
        functools.partial(mlp_kernel, act_dtype=_epilogue_dtype()),
        out_shape=jax.ShapeDtypeStruct((B_pad, 1), jnp.float32),
        grid=(B_pad // TB,),
        in_specs=in_specs,
        out_specs=pl.BlockSpec((TB, 1), lambda i: (i, 0)),
        compiler_params=pltpu.CompilerParams(
            dimension_semantics=("parallel",)),  # megacore on v7x
    )(x, *prepared)

    return out_p if B_pad == B else out_p[:B]


def init_params(key, input_dim):
    """Deterministic init matching nn.Linear shapes:
       D -> 2D -> int(1.5D) -> int(0.7D) -> 1."""
    dims = [input_dim, input_dim * 2, int(input_dim * 1.5),
            int(input_dim * 0.7), 1]
    params = []
    for i in range(4):
        key, kw, kb = jax.random.split(key, 3)
        bound = 1.0 / (dims[i] ** 0.5)  # PyTorch default init scheme
        # stored as [in, out] (transpose of PyTorch's [out, in]) for x @ W
        w = jax.random.uniform(kw, (dims[i], dims[i + 1]),
                               minval=-bound, maxval=bound, dtype=jnp.float32)
        b = jax.random.uniform(kb, (1, dims[i + 1]),
                               minval=-bound, maxval=bound, dtype=jnp.float32)
        params.append((w, b))
    return params


def reference_matched(x, params, act_dtype):
    """Mirrors the kernel's precision (bf16 MXU inputs, f32 accumulation,
    act_dtype bias/tanh, final layer as an explicit weighted lane reduce)."""
    h = x.astype(jnp.bfloat16)
    for (w, b) in params[:3]:
        acc = jnp.dot(h, w.astype(jnp.bfloat16),
                      preferred_element_type=jnp.float32) + b
        h = jnp.tanh(acc.astype(act_dtype)).astype(jnp.bfloat16)
    w4, b4 = params[3]
    w4_row = w4[:, 0].astype(jnp.bfloat16).astype(jnp.float32)
    return jnp.sum(h.astype(jnp.float32) * w4_row[None, :],
                   axis=-1, keepdims=True) + b4


def reference_f32(x, params):
    h = x
    for i, (w, b) in enumerate(params):
        h = h @ w + b
        if i < 3:
            h = jnp.tanh(h)
    return h


if __name__ == "__main__":
    key = jax.random.PRNGKey(0)
    input_dim = 32
    batch = 256  # > one batch tile -> exercises the pipelined batch grid

    key, kx = jax.random.split(key)
    x = jax.random.normal(kx, (batch, input_dim), dtype=jnp.float32)
    params = init_params(key, input_dim)

    prepared = prepare_params(params)  # one-time; out of the hot path
    fwd = jax.jit(nonlinear_network, static_argnames=("batch_tile",))

    y = fwd(x, prepared)
    y = jax.block_until_ready(y)
    assert y.shape == (batch, 1), y.shape

    # Precision-matched reference (bf16 MXU inputs, f32 accumulate, same
    # epilogue dtype, same final-layer reduce).
    y_ref = reference_matched(x, params, _epilogue_dtype())
    assert jnp.allclose(y, y_ref, atol=2e-3, rtol=2e-3), (
        float(jnp.max(jnp.abs(y - y_ref))))

    # Sanity check against the pure-f32 PyTorch-equivalent forward.
    y_f32 = reference_f32(x, params)
    assert jnp.allclose(y, y_f32, atol=7.5e-2, rtol=5e-2), (
        float(jnp.max(jnp.abs(y - y_f32))))

    print("KERNEL_OK")
</pallas_src>

<mosaic_0001>
module attributes {stable_mosaic.version = 11 : i64} {
  func.func @mlp_kernel(%arg0: i32, %arg1: memref<128x32xf32, #tpu.memory_space<vmem>>, %arg2: memref<32x128xbf16, #tpu.memory_space<vmem>>, %arg3: memref<1x128xf32, #tpu.memory_space<vmem>>, %arg4: memref<128x128xbf16, #tpu.memory_space<vmem>>, %arg5: memref<1x128xf32, #tpu.memory_space<vmem>>, %arg6: memref<128x128xbf16, #tpu.memory_space<vmem>>, %arg7: memref<1x128xf32, #tpu.memory_space<vmem>>, %arg8: memref<1x128xbf16, #tpu.memory_space<vmem>>, %arg9: memref<1x1xf32, #tpu.memory_space<vmem>>, %arg10: memref<128x1xf32, #tpu.memory_space<vmem>>) attributes {dimension_semantics = [#tpu.dimension_semantics<parallel>], iteration_bounds = array<i64: 2>, scalar_prefetch = 0 : i64, scratch_operands = 0 : i64, tpu.core_type = #tpu.core_type<tc>, window_params = [{transform_indices = @transform_0, window_bounds = array<i64: 128, 32>}, {pipeline_mode = #tpu.pipeline_mode<synchronous>, transform_indices = @transform_1, window_bounds = array<i64: 32, 128>}, {pipeline_mode = #tpu.pipeline_mode<synchronous>, transform_indices = @transform_2, window_bounds = array<i64: 1, 128>}, {pipeline_mode = #tpu.pipeline_mode<synchronous>, transform_indices = @transform_3, window_bounds = array<i64: 128, 128>}, {pipeline_mode = #tpu.pipeline_mode<synchronous>, transform_indices = @transform_4, window_bounds = array<i64: 1, 128>}, {pipeline_mode = #tpu.pipeline_mode<synchronous>, transform_indices = @transform_5, window_bounds = array<i64: 128, 128>}, {pipeline_mode = #tpu.pipeline_mode<synchronous>, transform_indices = @transform_6, window_bounds = array<i64: 1, 128>}, {pipeline_mode = #tpu.pipeline_mode<synchronous>, transform_indices = @transform_7, window_bounds = array<i64: 1, 128>}, {pipeline_mode = #tpu.pipeline_mode<synchronous>, transform_indices = @transform_8, window_bounds = array<i64: 1, 1>}, {transform_indices = @transform_9, window_bounds = array<i64: 128, 1>}]} {
    %c0 = arith.constant 0 : index
    %c0_0 = arith.constant 0 : index
    %0 = vector.load %arg1[%c0, %c0_0] : memref<128x32xf32, #tpu.memory_space<vmem>>, vector<128x32xf32>
    %1 = arith.truncf %0 : vector<128x32xf32> to vector<128x32xbf16>
    %c0_1 = arith.constant 0 : index
    %c0_2 = arith.constant 0 : index
    %2 = vector.load %arg2[%c0_1, %c0_2] : memref<32x128xbf16, #tpu.memory_space<vmem>>, vector<32x128xbf16>
    %cst = arith.constant dense<0.000000e+00> : vector<128x128xf32>
    %3 = tpu.matmul %1, %2, %cst {dimension_numbers = #tpu.dot_dimension_numbers<[1], [0], [0], [1], [0, 0, 1, 1], [], []>} : vector<128x32xbf16>, vector<32x128xbf16>, vector<128x128xf32> -> vector<128x128xf32>
    %c0_3 = arith.constant 0 : index
    %c0_4 = arith.constant 0 : index
    %4 = vector.load %arg3[%c0_3, %c0_4] : memref<1x128xf32, #tpu.memory_space<vmem>>, vector<1x128xf32>
    %5 = vector.broadcast %4 : vector<1x128xf32> to vector<128x128xf32>
    %6 = arith.addf %3, %5 : vector<128x128xf32>
    %7 = math.tanh %6 : vector<128x128xf32>
    %8 = arith.truncf %7 : vector<128x128xf32> to vector<128x128xbf16>
    %c0_5 = arith.constant 0 : index
    %c0_6 = arith.constant 0 : index
    %9 = vector.load %arg4[%c0_5, %c0_6] : memref<128x128xbf16, #tpu.memory_space<vmem>>, vector<128x128xbf16>
    %cst_7 = arith.constant dense<0.000000e+00> : vector<128x128xf32>
    %10 = tpu.matmul %8, %9, %cst_7 {dimension_numbers = #tpu.dot_dimension_numbers<[1], [0], [0], [1], [0, 0, 1, 1], [], []>} : vector<128x128xbf16>, vector<128x128xbf16>, vector<128x128xf32> -> vector<128x128xf32>
    %c0_8 = arith.constant 0 : index
    %c0_9 = arith.constant 0 : index
    %11 = vector.load %arg5[%c0_8, %c0_9] : memref<1x128xf32, #tpu.memory_space<vmem>>, vector<1x128xf32>
    %12 = vector.broadcast %11 : vector<1x128xf32> to vector<128x128xf32>
    %13 = arith.addf %10, %12 : vector<128x128xf32>
    %14 = math.tanh %13 : vector<128x128xf32>
    %15 = arith.truncf %14 : vector<128x128xf32> to vector<128x128xbf16>
    %c0_10 = arith.constant 0 : index
    %c0_11 = arith.constant 0 : index
    %16 = vector.load %arg6[%c0_10, %c0_11] : memref<128x128xbf16, #tpu.memory_space<vmem>>, vector<128x128xbf16>
    %cst_12 = arith.constant dense<0.000000e+00> : vector<128x128xf32>
    %17 = tpu.matmul %15, %16, %cst_12 {dimension_numbers = #tpu.dot_dimension_numbers<[1], [0], [0], [1], [0, 0, 1, 1], [], []>} : vector<128x128xbf16>, vector<128x128xbf16>, vector<128x128xf32> -> vector<128x128xf32>
    %c0_13 = arith.constant 0 : index
    %c0_14 = arith.constant 0 : index
    %18 = vector.load %arg7[%c0_13, %c0_14] : memref<1x128xf32, #tpu.memory_space<vmem>>, vector<1x128xf32>
    %19 = vector.broadcast %18 : vector<1x128xf32> to vector<128x128xf32>
    %20 = arith.addf %17, %19 : vector<128x128xf32>
    %21 = math.tanh %20 : vector<128x128xf32>
    %22 = arith.truncf %21 : vector<128x128xf32> to vector<128x128xbf16>
    %23 = arith.extf %22 : vector<128x128xbf16> to vector<128x128xf32>
    %c0_15 = arith.constant 0 : index
    %c0_16 = arith.constant 0 : index
    %24 = vector.load %arg8[%c0_15, %c0_16] : memref<1x128xbf16, #tpu.memory_space<vmem>>, vector<1x128xbf16>
    %25 = arith.extf %24 : vector<1x128xbf16> to vector<1x128xf32>
    %26 = vector.broadcast %25 : vector<1x128xf32> to vector<128x128xf32>
    %27 = arith.mulf %23, %26 : vector<128x128xf32>
    %cst_17 = arith.constant dense<0.000000e+00> : vector<128xf32>
    %28 = vector.multi_reduction <add>, %27, %cst_17 [1] : vector<128x128xf32> to vector<128xf32>
    %29 = vector.shape_cast %28 : vector<128xf32> to vector<128x1xf32>
    %c0_18 = arith.constant 0 : index
    %c0_19 = arith.constant 0 : index
    %30 = vector.load %arg9[%c0_18, %c0_19] : memref<1x1xf32, #tpu.memory_space<vmem>>, vector<1x1xf32>
    %31 = vector.broadcast %30 : vector<1x1xf32> to vector<128x1xf32>
    %32 = arith.addf %29, %31 : vector<128x1xf32>
    %c0_20 = arith.constant 0 : index
    %c0_21 = arith.constant 0 : index
    %33 = vector.load %arg10[%c0_20, %c0_21] : memref<128x1xf32, #tpu.memory_space<vmem>>, vector<128x1xf32>
    tpu.vector_store %arg10[%c0_20, %c0_21], %32 {strides = array<i32>} : memref<128x1xf32, #tpu.memory_space<vmem>>, vector<128x1xf32>,
    return
  }
  func.func @transform_0(%arg0: i32) -> (i32, i32) {
    %c0_i32 = arith.constant 0 : i32
    %c0_i32_0 = arith.constant 0 : i32
    return %arg0, %c0_i32 : i32, i32
  }
  func.func @transform_1(%arg0: i32) -> (i32, i32) {
    %c0_i32 = arith.constant 0 : i32
    %c0_i32_0 = arith.constant 0 : i32
    %c0_i32_1 = arith.constant 0 : i32
    return %c0_i32, %c0_i32_0 : i32, i32
  }
  func.func @transform_2(%arg0: i32) -> (i32, i32) {
    %c0_i32 = arith.constant 0 : i32
    %c0_i32_0 = arith.constant 0 : i32
    %c0_i32_1 = arith.constant 0 : i32
    return %c0_i32, %c0_i32_0 : i32, i32
  }
  func.func @transform_3(%arg0: i32) -> (i32, i32) {
    %c0_i32 = arith.constant 0 : i32
    %c0_i32_0 = arith.constant 0 : i32
    %c0_i32_1 = arith.constant 0 : i32
    return %c0_i32, %c0_i32_0 : i32, i32
  }
  func.func @transform_4(%arg0: i32) -> (i32, i32) {
    %c0_i32 = arith.constant 0 : i32
    %c0_i32_0 = arith.constant 0 : i32
    %c0_i32_1 = arith.constant 0 : i32
    return %c0_i32, %c0_i32_0 : i32, i32
  }
  func.func @transform_5(%arg0: i32) -> (i32, i32) {
    %c0_i32 = arith.constant 0 : i32
    %c0_i32_0 = arith.constant 0 : i32
    %c0_i32_1 = arith.constant 0 : i32
    return %c0_i32, %c0_i32_0 : i32, i32
  }
  func.func @transform_6(%arg0: i32) -> (i32, i32) {
    %c0_i32 = arith.constant 0 : i32
    %c0_i32_0 = arith.constant 0 : i32
    %c0_i32_1 = arith.constant 0 : i32
    return %c0_i32, %c0_i32_0 : i32, i32
  }
  func.func @transform_7(%arg0: i32) -> (i32, i32) {
    %c0_i32 = arith.constant 0 : i32
    %c0_i32_0 = arith.constant 0 : i32
    %c0_i32_1 = arith.constant 0 : i32
    return %c0_i32, %c0_i32_0 : i32, i32
  }
  func.func @transform_8(%arg0: i32) -> (i32, i32) {
    %c0_i32 = arith.constant 0 : i32
    %c0_i32_0 = arith.constant 0 : i32
    %c0_i32_1 = arith.constant 0 : i32
    return %c0_i32, %c0_i32_0 : i32, i32
  }
  func.func @transform_9(%arg0: i32) -> (i32, i32) {
    %c0_i32 = arith.constant 0 : i32
    %c0_i32_0 = arith.constant 0 : i32
    return %arg0, %c0_i32 : i32, i32
  }
}

</mosaic_0001>

<llo_original>
// kernel: nonlinear_network.1
$region0: #{nonlinear_network.1}
  #allocation0 [shape = 'u32[]', space=smem, size = 0x4, offset = 0x4, fixed_abs, tag = 'smem constant byte address 0x4 - core index']
  #allocation1 [shape = 'u32[144,128]{1,0:T(1,128)}', space=vmem, size = 0x12000, scoped, tag = 'internal scratch']
  #allocation2 [shape = 'f32[1,1]{1,0:T(1,128)S(1)}', space=vmem, size = 0x200, scoped, tag = 'scoped memory for nonlinear_network.1']
  %s0 = inlined_call_operand.vmem [shape: f32[256,32], index: 0, kind: input, shape index: {}]
  %s1 = inlined_call_operand.vmem [shape: bf16[32,128], index: 1, kind: input, shape index: {}]
  %s2 = inlined_call_operand.vmem [shape: f32[1,128], index: 2, kind: input, shape index: {}]
  %s3 = inlined_call_operand.vmem [shape: bf16[128,128], index: 3, kind: input, shape index: {}]
  %s4 = inlined_call_operand.vmem [shape: f32[1,128], index: 4, kind: input, shape index: {}]
  %s5 = inlined_call_operand.vmem [shape: bf16[128,128], index: 5, kind: input, shape index: {}]
  %s6 = inlined_call_operand.vmem [shape: f32[1,128], index: 6, kind: input, shape index: {}]
  %s7 = inlined_call_operand.vmem [shape: bf16[1,128], index: 7, kind: input, shape index: {}]
  %s8 = inlined_call_operand.<no memory space> [shape: f32[1,1], index: 8, kind: input, shape index: {}]
  %s9 = inlined_call_operand.vmem [shape: f32[256,1], index: 9, kind: output, shape index: {}]
  %s10 = sld [smem:[#allocation0]]
  $region69: #{nonlinear_network.1} parent=0
    _
  %s12 = ssub.s32 1, %s10
  %s13 = scalar_select 0, %s12, %s10
  %v14 = vstv %s8
  %15 = vst [vmem:[#allocation2] sm:$0x1] %v14
  loop: start=0, step=1, limit=4
  $region2: #{nonlinear_network.1} parent=0 // loop_pre_header
    _
  $region3: #{nonlinear_network.1} parent=0 // loop_header
    %s17 = sphi 0, %s21
    %p18 = scmp.ge.s32.totalorder %s17, 4
    %s27 = sphi 0, %s29
    %s30 = sphi 0, %s27
    %s31 = sphi 0, %s30
    %s47 = sphi 0, %s31
    %s51 = sphi 0, %s51
    %s53 = sphi 0, %s51
    %s54 = sphi 0, %s53
    %s68 = sphi 0, %s54
    %s72 = sphi 0, %s72
    %s74 = sphi 0, %s72
    %s75 = sphi 0, %s74
    %s89 = sphi 0, %s75
    %s93 = sphi 0, %s93
    %s95 = sphi 0, %s93
    %s96 = sphi 0, %s95
    %s110 = sphi 0, %s96
    %s114 = sphi 0, %s114
    %s116 = sphi 0, %s114
    %s117 = sphi 0, %s116
    %s131 = sphi 0, %s117
    %s135 = sphi 0, %s135
    %s137 = sphi 0, %s135
    %s138 = sphi 0, %s137
    %s152 = sphi 0, %s138
    %s156 = sphi 0, %s156
    %s158 = sphi 0, %s156
    %s159 = sphi 0, %s158
    %s173 = sphi 0, %s159
    %s177 = sphi 0, %s177
    %s179 = sphi 0, %s177
    %s180 = sphi 0, %s179
    %s194 = sphi 0, %s180
    %s198 = sphi 0, %s198
    %s200 = sphi 0, %s198
    %s201 = sphi 0, %s200
    %s215 = sphi 0, %s201
    %s221 = sphi 0, %s223
    %s224 = sphi 0, %s221
    %s225 = sphi 0, %s224
    %s241 = sphi 0, %s225
  $region4: #{nonlinear_network.1} parent=0 // loop_header_branch
    %20 = sbr.rel (%p18) target = $region8
  $region5: #{nonlinear_network.1} parent=0 // loop_body
    %s22 = ssub.s32 %s17, 1
    %s23 = ssub.s32 %s17, 2
    %s24 = sadd.s32 %s17, 1
    %s25 = ssub.s32 %s17, %s24
    %p26 = scmp.eq.s32.totalorder %s25, 0
    %s28 = sadd.s32 %s27, 1
    %s29 = scalar_select %p26, %s27, %s28
    %p32 = pneg %p26
    %p33 = scmp.eq.s32.totalorder %s17, 1
    %p34 = por %p32, %p33
    %p35 = scmp.ne.s32.totalorder %s27, %s30
    %p36 = scmp.eq.s32.totalorder %s17, 0
    %p37 = por %p35, %p36
    %p38 = scmp.ne.s32.totalorder %s27, %s30
    %p39 = scmp.eq.s32.totalorder %s22, 1
    %p40 = por %p38, %p39
    %p41 = scmp.ne.s32.totalorder %s30, %s31
    %p42 = scmp.eq.s32.totalorder %s22, 0
    %p43 = por %p41, %p42
    %p44 = scmp.ne.s32.totalorder %s30, %s31
    %p45 = scmp.eq.s32.totalorder %s23, 1
    %p46 = por %p44, %p45
    %p48 = scmp.ne.s32.totalorder %s31, %s47
    %p49 = scmp.eq.s32.totalorder %s23, 0
    %p50 = por %p48, %p49
    %s52 = sadd.s32 %s51, 1
    %p55 = scmp.eq.s32.totalorder %s17, 1
    %p56 = scmp.ne.s32.totalorder %s51, %s53
    %p57 = scmp.eq.s32.totalorder %s17, 0
    %p58 = por %p56, %p57
    %p59 = scmp.ne.s32.totalorder %s51, %s53
    %p60 = scmp.eq.s32.totalorder %s22, 1
    %p61 = por %p59, %p60
    %p62 = scmp.ne.s32.totalorder %s53, %s54
    %p63 = scmp.eq.s32.totalorder %s22, 0
    %p64 = por %p62, %p63
    %p65 = scmp.ne.s32.totalorder %s53, %s54
    %p66 = scmp.eq.s32.totalorder %s23, 1
    %p67 = por %p65, %p66
    %p69 = scmp.ne.s32.totalorder %s54, %s68
    %p70 = scmp.eq.s32.totalorder %s23, 0
    %p71 = por %p69, %p70
    %s73 = sadd.s32 %s72, 1
    %p76 = scmp.eq.s32.totalorder %s17, 1
    %p77 = scmp.ne.s32.totalorder %s72, %s74
    %p78 = scmp.eq.s32.totalorder %s17, 0
    %p79 = por %p77, %p78
    %p80 = scmp.ne.s32.totalorder %s72, %s74
    %p81 = scmp.eq.s32.totalorder %s22, 1
    %p82 = por %p80, %p81
    %p83 = scmp.ne.s32.totalorder %s74, %s75
    %p84 = scmp.eq.s32.totalorder %s22, 0
    %p85 = por %p83, %p84
    %p86 = scmp.ne.s32.totalorder %s74, %s75
    %p87 = scmp.eq.s32.totalorder %s23, 1
    %p88 = por %p86, %p87
    %p90 = scmp.ne.s32.totalorder %s75, %s89
    %p91 = scmp.eq.s32.totalorder %s23, 0
    %p92 = por %p90, %p91
    %s94 = sadd.s32 %s93, 1
    %p97 = scmp.eq.s32.totalorder %s17, 1
    %p98 = scmp.ne.s32.totalorder %s93, %s95
    %p99 = scmp.eq.s32.totalorder %s17, 0
    %p100 = por %p98, %p99
    %p101 = scmp.ne.s32.totalorder %s93, %s95
    %p102 = scmp.eq.s32.totalorder %s22, 1
    %p103 = por %p101, %p102
    %p104 = scmp.ne.s32.totalorder %s95, %s96
    %p105 = scmp.eq.s32.totalorder %s22, 0
    %p106 = por %p104, %p105
    %p107 = scmp.ne.s32.totalorder %s95, %s96
    %p108 = scmp.eq.s32.totalorder %s23, 1
    %p109 = por %p107, %p108
    %p111 = scmp.ne.s32.totalorder %s96, %s110
    %p112 = scmp.eq.s32.totalorder %s23, 0
    %p113 = por %p111, %p112
    %s115 = sadd.s32 %s114, 1
    %p118 = scmp.eq.s32.totalorder %s17, 1
    %p119 = scmp.ne.s32.totalorder %s114, %s116
    %p120 = scmp.eq.s32.totalorder %s17, 0
    %p121 = por %p119, %p120
    %p122 = scmp.ne.s32.totalorder %s114, %s116
    %p123 = scmp.eq.s32.totalorder %s22, 1
    %p124 = por %p122, %p123
    %p125 = scmp.ne.s32.totalorder %s116, %s117
    %p126 = scmp.eq.s32.totalorder %s22, 0
    %p127 = por %p125, %p126
    %p128 = scmp.ne.s32.totalorder %s116, %s117
    %p129 = scmp.eq.s32.totalorder %s23, 1
    %p130 = por %p128, %p129
    %p132 = scmp.ne.s32.totalorder %s117, %s131
    %p133 = scmp.eq.s32.totalorder %s23, 0
    %p134 = por %p132, %p133
    %s136 = sadd.s32 %s135, 1
    %p139 = scmp.eq.s32.totalorder %s17, 1
    %p140 = scmp.ne.s32.totalorder %s135, %s137
    %p141 = scmp.eq.s32.totalorder %s17, 0
    %p142 = por %p140, %p141
    %p143 = scmp.ne.s32.totalorder %s135, %s137
    %p144 = scmp.eq.s32.totalorder %s22, 1
    %p145 = por %p143, %p144
    %p146 = scmp.ne.s32.totalorder %s137, %s138
    %p147 = scmp.eq.s32.totalorder %s22, 0
    %p148 = por %p146, %p147
    %p149 = scmp.ne.s32.totalorder %s137, %s138
    %p150 = scmp.eq.s32.totalorder %s23, 1
    %p151 = por %p149, %p150
    %p153 = scmp.ne.s32.totalorder %s138, %s152
    %p154 = scmp.eq.s32.totalorder %s23, 0
    %p155 = por %p153, %p154
    %s157 = sadd.s32 %s156, 1
    %p160 = scmp.eq.s32.totalorder %s17, 1
    %p161 = scmp.ne.s32.totalorder %s156, %s158
    %p162 = scmp.eq.s32.totalorder %s17, 0
    %p163 = por %p161, %p162
    %p164 = scmp.ne.s32.totalorder %s156, %s158
    %p165 = scmp.eq.s32.totalorder %s22, 1
    %p166 = por %p164, %p165
    %p167 = scmp.ne.s32.totalorder %s158, %s159
    %p168 = scmp.eq.s32.totalorder %s22, 0
    %p169 = por %p167, %p168
    %p170 = scmp.ne.s32.totalorder %s158, %s159
    %p171 = scmp.eq.s32.totalorder %s23, 1
    %p172 = por %p170, %p171
    %p174 = scmp.ne.s32.totalorder %s159, %s173
    %p175 = scmp.eq.s32.totalorder %s23, 0
    %p176 = por %p174, %p175
    %s178 = sadd.s32 %s177, 1
    %p181 = scmp.eq.s32.totalorder %s17, 1
    %p182 = scmp.ne.s32.totalorder %s177, %s179
    %p183 = scmp.eq.s32.totalorder %s17, 0
    %p184 = por %p182, %p183
    %p185 = scmp.ne.s32.totalorder %s177, %s179
    %p186 = scmp.eq.s32.totalorder %s22, 1
    %p187 = por %p185, %p186
    %p188 = scmp.ne.s32.totalorder %s179, %s180
    %p189 = scmp.eq.s32.totalorder %s22, 0
    %p190 = por %p188, %p189
    %p191 = scmp.ne.s32.totalorder %s179, %s180
    %p192 = scmp.eq.s32.totalorder %s23, 1
    %p193 = por %p191, %p192
    %p195 = scmp.ne.s32.totalorder %s180, %s194
    %p196 = scmp.eq.s32.totalorder %s23, 0
    %p197 = por %p195, %p196
    %s199 = sadd.s32 %s198, 1
    %p202 = scmp.eq.s32.totalorder %s17, 1
    %p203 = scmp.ne.s32.totalorder %s198, %s200
    %p204 = scmp.eq.s32.totalorder %s17, 0
    %p205 = por %p203, %p204
    %p206 = scmp.ne.s32.totalorder %s198, %s200
    %p207 = scmp.eq.s32.totalorder %s22, 1
    %p208 = por %p206, %p207
    %p209 = scmp.ne.s32.totalorder %s200, %s201
    %p210 = scmp.eq.s32.totalorder %s22, 0
    %p211 = por %p209, %p210
    %p212 = scmp.ne.s32.totalorder %s200, %s201
    %p213 = scmp.eq.s32.totalorder %s23, 1
    %p214 = por %p212, %p213
    %p216 = scmp.ne.s32.totalorder %s201, %s215
    %p217 = scmp.eq.s32.totalorder %s23, 0
    %p218 = por %p216, %p217
    %s219 = ssub.s32 %s17, %s24
    %p220 = scmp.eq.s32.totalorder %s219, 0
    %s222 = sadd.s32 %s221, 1
    %s223 = scalar_select %p220, %s221, %s222
    %p226 = pneg %p220
    %p227 = scmp.eq.s32.totalorder %s17, 1
    %p228 = por %p226, %p227
    %p229 = scmp.ne.s32.totalorder %s221, %s224
    %p230 = scmp.eq.s32.totalorder %s17, 0
    %p231 = por %p229, %p230
    %p232 = scmp.ne.s32.totalorder %s221, %s224
    %p233 = scmp.eq.s32.totalorder %s22, 1
    %p234 = por %p232, %p233
    %p235 = scmp.ne.s32.totalorder %s224, %s225
    %p236 = scmp.eq.s32.totalorder %s22, 0
    %p237 = por %p235, %p236
    %p238 = scmp.ne.s32.totalorder %s224, %s225
    %p239 = scmp.eq.s32.totalorder %s23, 1
    %p240 = por %p238, %p239
    %p242 = scmp.ne.s32.totalorder %s225, %s241
    %p243 = scmp.eq.s32.totalorder %s23, 0
    %p244 = por %p242, %p243
    %p245 = scmp.le.s32.totalorder 1, %s17
    %p246 = scmp.lt.s32.totalorder %s17, 3
    %p247 = pnand %p245, %p246
    %p248 = pneg %p247
    // Predicated region
    $region9: #{nonlinear_network.1} parent=5 // pred_check
      _
    $region10: #{nonlinear_network.1} parent=5 // pred_check_branch
      %250 = sbr.rel (%p247) target = $region12
    $region11: #{nonlinear_network.1} parent=5 // pred_region
      %s251 = ssub.s32 %s17, 1
      // Predicated region
      $region13: #{nonlinear_network.1} parent=11 // pred_check
        %p252 = pneg %p64
      $region14: #{nonlinear_network.1} parent=11 // pred_check_branch
        %254 = sbr.rel (%p252) target = $region16
      $region15: #{nonlinear_network.1} parent=11 // pred_region
        _
      $region16: #{nonlinear_network.1} parent=11 // pred_fallthru
        _
      // Predicated region
      $region17: #{nonlinear_network.1} parent=11 // pred_check
        %p255 = pneg %p85
      $region18: #{nonlinear_network.1} parent=11 // pred_check_branch
        %257 = sbr.rel (%p255) target = $region20
      $region19: #{nonlinear_network.1} parent=11 // pred_region
        _
      $region20: #{nonlinear_network.1} parent=11 // pred_fallthru
        _
      // Predicated region
      $region21: #{nonlinear_network.1} parent=11 // pred_check
        %p258 = pneg %p106
      $region22: #{nonlinear_network.1} parent=11 // pred_check_branch
        %260 = sbr.rel (%p258) target = $region24
      $region23: #{nonlinear_network.1} parent=11 // pred_region
        _
      $region24: #{nonlinear_network.1} parent=11 // pred_fallthru
        _
      // Predicated region
      $region25: #{nonlinear_network.1} parent=11 // pred_check
        %p261 = pneg %p127
      $region26: #{nonlinear_network.1} parent=11 // pred_check_branch
        %263 = sbr.rel (%p261) target = $region28
      $region27: #{nonlinear_network.1} parent=11 // pred_region
        _
      $region28: #{nonlinear_network.1} parent=11 // pred_fallthru
        _
      // Predicated region
      $region29: #{nonlinear_network.1} parent=11 // pred_check
        %p264 = pneg %p148
      $region30: #{nonlinear_network.1} parent=11 // pred_check_branch
        %266 = sbr.rel (%p264) target = $region32
      $region31: #{nonlinear_network.1} parent=11 // pred_region
        _
      $region32: #{nonlinear_network.1} parent=11 // pred_fallthru
        _
      // Predicated region
      $region33: #{nonlinear_network.1} parent=11 // pred_check
        %p267 = pneg %p169
      $region34: #{nonlinear_network.1} parent=11 // pred_check_branch
        %269 = sbr.rel (%p267) target = $region36
      $region35: #{nonlinear_network.1} parent=11 // pred_region
        _
      $region36: #{nonlinear_network.1} parent=11 // pred_fallthru
        _
      // Predicated region
      $region37: #{nonlinear_network.1} parent=11 // pred_check
        %p270 = pneg %p190
      $region38: #{nonlinear_network.1} parent=11 // pred_check_branch
        %272 = sbr.rel (%p270) target = $region40
      $region39: #{nonlinear_network.1} parent=11 // pred_region
        _
      $region40: #{nonlinear_network.1} parent=11 // pred_fallthru
        _
      // Predicated region
      $region41: #{nonlinear_network.1} parent=11 // pred_check
        %p273 = pneg %p211
      $region42: #{nonlinear_network.1} parent=11 // pred_check_branch
        %275 = sbr.rel (%p273) target = $region44
      $region43: #{nonlinear_network.1} parent=11 // pred_region
        _
      $region44: #{nonlinear_network.1} parent=11 // pred_fallthru
        _
    $region12: #{nonlinear_network.1} parent=5 // pred_fallthru
      _
    %p276 = scmp.lt.s32.totalorder %s17, 2
    // Predicated region
    $region45: #{nonlinear_network.1} parent=5 // pred_check
      %p277 = pneg %p276
    $region46: #{nonlinear_network.1} parent=5 // pred_check_branch
      %279 = sbr.rel (%p277) target = $region48
    $region47: #{nonlinear_network.1} parent=5 // pred_region
      // Predicated region
      $region49: #{nonlinear_network.1} parent=47 // pred_check
        %p280 = pneg %p37
      $region50: #{nonlinear_network.1} parent=47 // pred_check_branch
        %282 = sbr.rel (%p280) target = $region52
      $region51: #{nonlinear_network.1} parent=47 // pred_region
        %s283 = smul.u32 16, %s17
        %p284 = scmp.lt.s32.totalorder %s283, 31
        %s285 = scalar_select %p284, %s283, 31
        %s286 = smul.addr %s285, 8
        %s287 = scalar_lea.vmem %s0, %s286
        %s288 = smul.u32 16, %s17
      $region52: #{nonlinear_network.1} parent=47 // pred_fallthru
        _
    $region48: #{nonlinear_network.1} parent=5 // pred_fallthru
      _
    %p289 = scmp.le.s32.totalorder 1, %s17
    %p290 = scmp.lt.s32.totalorder %s17, 3
    %p291 = pnand %p289, %p290
    %p292 = pneg %p291
    // Predicated region
    $region53: #{nonlinear_network.1} parent=5 // pred_check
      _
    $region54: #{nonlinear_network.1} parent=5 // pred_check_branch
      %294 = sbr.rel (%p291) target = $region56
    $region55: #{nonlinear_network.1} parent=5 // pred_region
      %s295 = ssub.s32 %s17, 1
      %s296 = smul.u32 16, %s22
      %p297 = scmp.lt.s32.totalorder %s296, 31
      %s298 = scalar_select %p297, %s296, 31
      %s299 = smul.addr %s298, 8
      %s300 = scalar_lea.vmem %s0, %s299
      %p301 = pneg %p43
      %p302 = pneg %p40
      %p303 = pneg %p64
      %p304 = pneg %p61
      %p305 = pneg %p85
      %p306 = pneg %p82
      %p307 = pneg %p106
      %p308 = pneg %p103
      %p309 = pneg %p127
      %p310 = pneg %p124
      %p311 = pneg %p148
      %p312 = pneg %p145
      %p313 = pneg %p169
      %p314 = pneg %p166
      %p315 = pneg %p190
      %p316 = pneg %p187
      %p317 = pneg %p211
      %p318 = pneg %p208
      %p319 = pneg %p237
      %p320 = pneg %p234
      %s321 = smul.u32 16, %s22
      %p322 = scmp.lt.s32.totalorder %s321, 31
      %s323 = scalar_select %p322, %s321, 31
      %s324 = smul.addr %s323, 8
      %s325 = scalar_lea.vmem %s9, %s324
      %s326 = smul.u32 16, %s22
      %p327 = scmp.lt.s32.totalorder %s326, 31
      %s328 = scalar_select %p327, %s326, 31
      %s329 = smul.addr %s328, 8
      %s330 = scalar_lea.vmem %s0, %s329
      %s331 = smul.u32 16, %s22
      %s332 = smul.u32 16, %s22
      %p333 = scmp.lt.s32.totalorder %s332, 31
      %s334 = scalar_select %p333, %s332, 31
      %s335 = smul.addr %s334, 8
      %s336 = scalar_lea.vmem %s9, %s335
      %s337 = smul.u32 16, %s22
      %v339 = vld [vmem:[%s330] sm:$0xff]
      %v340 = vld [vmem:[%s330 + $0x8] sm:$0xff]
      %v341 = vld [vmem:[%s330 + $0x10] sm:$0xff]
      %v342 = vld [vmem:[%s330 + $0x18] sm:$0xff]
      %v343 = vld [vmem:[%s330 + $0x20] sm:$0xff]
      %v344 = vld [vmem:[%s330 + $0x28] sm:$0xff]
      %v345 = vld [vmem:[%s330 + $0x30] sm:$0xff]
      %v346 = vld [vmem:[%s330 + $0x38] sm:$0xff]
      %v347 = vld [vmem:[%s330 + $0x40] sm:$0xff]
      %v348 = vld [vmem:[%s330 + $0x48] sm:$0xff]
      %v349 = vld [vmem:[%s330 + $0x50] sm:$0xff]
      %v350 = vld [vmem:[%s330 + $0x58] sm:$0xff]
      %v351 = vld [vmem:[%s330 + $0x60] sm:$0xff]
      %v352 = vld [vmem:[%s330 + $0x68] sm:$0xff]
      %v353 = vld [vmem:[%s330 + $0x70] sm:$0xff]
      %v354 = vld [vmem:[%s330 + $0x78] sm:$0xff]
      %v355 = vpack.c.bf16 %v340, %v339
      %v356 = vpack.c.bf16 %v342, %v341
      %v357 = vpack.c.bf16 %v344, %v343
      %v358 = vpack.c.bf16 %v346, %v345
      %v359 = vpack.c.bf16 %v348, %v347
      %v360 = vpack.c.bf16 %v350, %v349
      %v361 = vpack.c.bf16 %v352, %v351
      %v362 = vpack.c.bf16 %v354, %v353
      %v363 = vld [vmem:[%s1] sm:$0xf]
      %v364 = vld [vmem:[%s1 + $0x4] sm:$0xf]
      %v365 = vld [vmem:[%s1 + $0x8] sm:$0xf]
      %v366 = vld [vmem:[%s1 + $0xc] sm:$0xf]
      %v367 = vld [vmem:[%s2] sm:$0x1]
      %v369 = vlaneseq
      %v370 = vshrl.u32 %v369, 7
      %v371 = vsub.s32 0, %v370
      %v372 = vrot.slane %v367, %v371
      %v378 = vunpack.c.l.b16 %v363
      %v379 = vunpack.c.l.b16 %v364
      %v380 = vunpack.c.l.b16 %v365
      %v381 = vunpack.c.l.b16 %v366
      %v382 = vpack.c.b16 %v379, %v378
      %v383 = vpack.c.b16 %v381, %v380
      %vm386 = vcmask 261120
      %v388 = vsel %vm386, %v355, 0
      %v391 = vsel %vm386, %v356, 0
      %v394 = vsel %vm386, %v357, 0
      %v397 = vsel %vm386, %v358, 0
      %v400 = vsel %vm386, %v359, 0
      %v403 = vsel %vm386, %v360, 0
      %v406 = vsel %vm386, %v361, 0
      %v409 = vsel %vm386, %v362, 0
      %411 = vmatprep.subr.bf16.mxu0 0
      %412 = vmatpush1.bf16.msra.mxu0 %v382
      %413 = vmatprep.subr.bf16.mxu0 0
      %414 = vmatpush1.bf16.msra.mxu0 %v383
      %415 = vmatprep.subr.bf16.mxu0 0
      %416 = vmatpush1.bf16.msra.mxu0 0
      %417 = vmatprep.subr.bf16.mxu0 0
      %418 = vmatpush1.bf16.msra.mxu0 0
      %419 = vmatprep.subr.bf16.mxu0 0
      %420 = vmatpush1.bf16.msra.mxu0 0
      %421 = vmatprep.subr.bf16.mxu0 0
      %422 = vmatpush1.bf16.msra.mxu0 0
      %423 = vmatprep.subr.bf16.mxu0 0
      %424 = vmatpush1.bf16.msra.mxu0 0
      %425 = vmatprep.subr.bf16.mxu0 0
      %426 = vmatpush1.bf16.msra.mxu0 0
      %427 = vmatprep.subr.bf16.mxu0 0
      %428 = vmatpush1.bf16.msra.mxu0 0
      %429 = vmatprep.subr.bf16.mxu0 0
      %430 = vmatpush1.bf16.msra.mxu0 0
      %431 = vmatprep.subr.bf16.mxu0 0
      %432 = vmatpush1.bf16.msra.mxu0 0
      %433 = vmatprep.subr.bf16.mxu0 0
      %434 = vmatpush1.bf16.msra.mxu0 0
      %435 = vmatprep.subr.bf16.mxu0 0
      %436 = vmatpush1.bf16.msra.mxu0 0
      %437 = vmatprep.subr.bf16.mxu0 0
      %438 = vmatpush1.bf16.msra.mxu0 0
      %439 = vmatprep.subr.bf16.mxu0 0
      %440 = vmatpush1.bf16.msra.mxu0 0
      %441 = vmatprep.subr.bf16.mxu0 0
      %442 = vmatpush1.bf16.msra.mxu0 0
      %443 = vmatprep.mubr.bf16.mxu0 0
      %444 = vmatmul.mubr.bf16.gmra.mrb[0].mxu0 %v388
      %v445 = vpop.f32.mrb[0].mxu0
      %v446 = vadd.f32 %v372, %v445
      %v447 = vpop.f32.mrb[0].mxu0
      %v448 = vpop.f32.mrb[0].mxu0
      %v449 = vadd.f32 %v372, %v448
      %v450 = vpop.f32.mrb[0].mxu0
      %451 = vmatprep.mubr.bf16.mxu0 0
      %452 = vmatmul.mubr.bf16.gmra.mrb[0].mxu0 %v391
      %v453 = vpop.f32.mrb[0].mxu0
      %v454 = vadd.f32 %v372, %v453
      %v455 = vpop.f32.mrb[0].mxu0
      %v456 = vpop.f32.mrb[0].mxu0
      %v457 = vadd.f32 %v372, %v456
      %v458 = vpop.f32.mrb[0].mxu0
      %459 = vmatprep.mubr.bf16.mxu0 0
      %460 = vmatmul.mubr.bf16.gmra.mrb[0].mxu0 %v394
      %v461 = vpop.f32.mrb[0].mxu0
      %v462 = vadd.f32 %v372, %v461
      %v463 = vpop.f32.mrb[0].mxu0
      %v464 = vpop.f32.mrb[0].mxu0
      %v465 = vadd.f32 %v372, %v464
      %v466 = vpop.f32.mrb[0].mxu0
      %467 = vmatprep.mubr.bf16.mxu0 0
      %468 = vmatmul.mubr.bf16.gmra.mrb[0].mxu0 %v397
      %v469 = vpop.f32.mrb[0].mxu0
      %v470 = vadd.f32 %v372, %v469
      %v471 = vpop.f32.mrb[0].mxu0
      %v472 = vpop.f32.mrb[0].mxu0
      %v473 = vadd.f32 %v372, %v472
      %v474 = vpop.f32.mrb[0].mxu0
      %475 = vmatprep.mubr.bf16.mxu0 0
      %476 = vmatmul.mubr.bf16.gmra.mrb[0].mxu0 %v400
      %v477 = vpop.f32.mrb[0].mxu0
      %v478 = vadd.f32 %v372, %v477
      %v479 = vpop.f32.mrb[0].mxu0
      %v480 = vpop.f32.mrb[0].mxu0
      %v481 = vadd.f32 %v372, %v480
      %v482 = vpop.f32.mrb[0].mxu0
      %483 = vmatprep.mubr.bf16.mxu0 0
      %484 = vmatmul.mubr.bf16.gmra.mrb[0].mxu0 %v403
      %v485 = vpop.f32.mrb[0].mxu0
      %v486 = vadd.f32 %v372, %v485
      %v487 = vpop.f32.mrb[0].mxu0
      %v488 = vpop.f32.mrb[0].mxu0
      %v489 = vadd.f32 %v372, %v488
      %v490 = vpop.f32.mrb[0].mxu0
      %491 = vmatprep.mubr.bf16.mxu0 0
      %492 = vmatmul.mubr.bf16.gmra.mrb[0].mxu0 %v406
      %v493 = vpop.f32.mrb[0].mxu0
      %v494 = vadd.f32 %v372, %v493
      %v495 = vpop.f32.mrb[0].mxu0
      %v496 = vpop.f32.mrb[0].mxu0
      %v497 = vadd.f32 %v372, %v496
      %v498 = vpop.f32.mrb[0].mxu0
      %499 = vmatprep.mubr.bf16.mxu0 0
      %500 = vmatmul.mubr.bf16.gmra.mrb[0].mxu0 %v409
      %v501 = vpop.f32.mrb[0].mxu0
      %v502 = vadd.f32 %v372, %v501
      %v503 = vpop.f32.mrb[0].mxu0
      %v504 = vpop.f32.mrb[0].mxu0
      %v505 = vadd.f32 %v372, %v504
      %v506 = vpop.f32.mrb[0].mxu0
      %507 = vdwg.mxu0
      %v508 = vtanh.pop %v446
      %v509 = vtanh.pop %v449
      %v510 = vtanh.pop %v454
      %v511 = vtanh.pop %v457
      %v512 = vtanh.pop %v462
      %v513 = vtanh.pop %v465
      %v514 = vtanh.pop %v470
      %v515 = vtanh.pop %v473
      %v516 = vtanh.pop %v478
      %v517 = vtanh.pop %v481
      %v518 = vtanh.pop %v486
      %v519 = vtanh.pop %v489
      %v520 = vtanh.pop %v494
      %v521 = vtanh.pop %v497
      %v522 = vtanh.pop %v502
      %v523 = vtanh.pop %v505
      %v524 = vpack.c.bf16 %v509, %v508
      %v525 = vpack.c.bf16 %v511, %v510
      %v526 = vpack.c.bf16 %v513, %v512
      %v527 = vpack.c.bf16 %v515, %v514
      %v528 = vpack.c.bf16 %v517, %v516
      %v529 = vpack.c.bf16 %v519, %v518
      %v530 = vpack.c.bf16 %v521, %v520
      %v531 = vpack.c.bf16 %v523, %v522
      %v532 = vld [vmem:[%s3] sm:$0xf]
      %v533 = vld [vmem:[%s3 + $0x4] sm:$0xf]
      %v534 = vld [vmem:[%s3 + $0x8] sm:$0xf]
      %v535 = vld [vmem:[%s3 + $0xc] sm:$0xf]
      %v536 = vld [vmem:[%s3 + $0x10] sm:$0xf]
      %v537 = vld [vmem:[%s3 + $0x14] sm:$0xf]
      %v538 = vld [vmem:[%s3 + $0x18] sm:$0xf]
      %v539 = vld [vmem:[%s3 + $0x1c] sm:$0xf]
      %v540 = vld [vmem:[%s3 + $0x20] sm:$0xf]
      %v541 = vld [vmem:[%s3 + $0x24] sm:$0xf]
      %v542 = vld [vmem:[%s3 + $0x28] sm:$0xf]
      %v543 = vld [vmem:[%s3 + $0x2c] sm:$0xf]
      %v544 = vld [vmem:[%s3 + $0x30] sm:$0xf]
      %v545 = vld [vmem:[%s3 + $0x34] sm:$0xf]
      %v546 = vld [vmem:[%s3 + $0x38] sm:$0xf]
      %v547 = vld [vmem:[%s3 + $0x3c] sm:$0xf]
      %v548 = vld [vmem:[%s4] sm:$0x1]
      %v550 = vlaneseq
      %v551 = vshrl.u32 %v550, 7
      %v552 = vsub.s32 0, %v551
      %v553 = vrot.slane %v548, %v552
      %v571 = vunpack.c.l.b16 %v532
      %v572 = vunpack.c.l.b16 %v533
      %v573 = vunpack.c.l.b16 %v534
      %v574 = vunpack.c.l.b16 %v535
      %v575 = vunpack.c.l.b16 %v536
      %v576 = vunpack.c.l.b16 %v537
      %v577 = vunpack.c.l.b16 %v538
      %v578 = vunpack.c.l.b16 %v539
      %v579 = vunpack.c.l.b16 %v540
      %v580 = vunpack.c.l.b16 %v541
      %v581 = vunpack.c.l.b16 %v542
      %v582 = vunpack.c.l.b16 %v543
      %v583 = vunpack.c.l.b16 %v544
      %v584 = vunpack.c.l.b16 %v545
      %v585 = vunpack.c.l.b16 %v546
      %v586 = vunpack.c.l.b16 %v547
      %v587 = vpack.c.b16 %v572, %v571
      %v588 = vpack.c.b16 %v574, %v573
      %v589 = vpack.c.b16 %v576, %v575
      %v590 = vpack.c.b16 %v578, %v577
      %v591 = vpack.c.b16 %v580, %v579
      %v592 = vpack.c.b16 %v582, %v581
      %v593 = vpack.c.b16 %v584, %v583
      %v594 = vpack.c.b16 %v586, %v585
      %603 = vmatprep.subr.bf16.mxu0 0
      %604 = vmatpush1.bf16.msra.mxu0 %v587
      %605 = vmatprep.subr.bf16.mxu0 0
      %606 = vmatpush1.bf16.msra.mxu0 %v588
      %607 = vmatprep.subr.bf16.mxu0 0
      %608 = vmatpush1.bf16.msra.mxu0 %v589
      %609 = vmatprep.subr.bf16.mxu0 0
      %610 = vmatpush1.bf16.msra.mxu0 %v590
      %611 = vmatprep.subr.bf16.mxu0 0
      %612 = vmatpush1.bf16.msra.mxu0 %v591
      %613 = vmatprep.subr.bf16.mxu0 0
      %614 = vmatpush1.bf16.msra.mxu0 %v592
      %615 = vmatprep.subr.bf16.mxu0 0
      %616 = vmatpush1.bf16.msra.mxu0 %v593
      %617 = vmatprep.subr.bf16.mxu0 0
      %618 = vmatpush1.bf16.msra.mxu0 %v594
      %619 = vmatprep.subr.bf16.mxu0 0
      %620 = vmatpush1.bf16.msra.mxu0 0
      %621 = vmatprep.subr.bf16.mxu0 0
      %622 = vmatpush1.bf16.msra.mxu0 0
      %623 = vmatprep.subr.bf16.mxu0 0
      %624 = vmatpush1.bf16.msra.mxu0 0
      %625 = vmatprep.subr.bf16.mxu0 0
      %626 = vmatpush1.bf16.msra.mxu0 0
      %627 = vmatprep.subr.bf16.mxu0 0
      %628 = vmatpush1.bf16.msra.mxu0 0
      %629 = vmatprep.subr.bf16.mxu0 0
      %630 = vmatpush1.bf16.msra.mxu0 0
      %631 = vmatprep.subr.bf16.mxu0 0
      %632 = vmatpush1.bf16.msra.mxu0 0
      %633 = vmatprep.subr.bf16.mxu0 0
      %634 = vmatpush1.bf16.msra.mxu0 0
      %635 = vmatprep.mubr.bf16.mxu0 0
      %636 = vmatmul.mubr.bf16.gmra.mrb[0].mxu0 %v524
      %v637 = vpop.f32.mrb[0].mxu0
      %v638 = vadd.f32 %v553, %v637
      %v639 = vpop.f32.mrb[0].mxu0
      %v640 = vpop.f32.mrb[0].mxu0
      %v641 = vadd.f32 %v553, %v640
      %v642 = vpop.f32.mrb[0].mxu0
      %643 = vmatprep.mubr.bf16.mxu0 0
      %644 = vmatmul.mubr.bf16.gmra.mrb[0].mxu0 %v525
      %v645 = vpop.f32.mrb[0].mxu0
      %v646 = vadd.f32 %v553, %v645
      %v647 = vpop.f32.mrb[0].mxu0
      %v648 = vpop.f32.mrb[0].mxu0
      %v649 = vadd.f32 %v553, %v648
      %v650 = vpop.f32.mrb[0].mxu0
      %651 = vmatprep.mubr.bf16.mxu0 0
      %652 = vmatmul.mubr.bf16.gmra.mrb[0].mxu0 %v526
      %v653 = vpop.f32.mrb[0].mxu0
      %v654 = vadd.f32 %v553, %v653
      %v655 = vpop.f32.mrb[0].mxu0
      %v656 = vpop.f32.mrb[0].mxu0
      %v657 = vadd.f32 %v553, %v656
      %v658 = vpop.f32.mrb[0].mxu0
      %659 = vmatprep.mubr.bf16.mxu0 0
      %660 = vmatmul.mubr.bf16.gmra.mrb[0].mxu0 %v527
      %v661 = vpop.f32.mrb[0].mxu0
      %v662 = vadd.f32 %v553, %v661
      %v663 = vpop.f32.mrb[0].mxu0
      %v664 = vpop.f32.mrb[0].mxu0
      %v665 = vadd.f32 %v553, %v664
      %v666 = vpop.f32.mrb[0].mxu0
      %667 = vmatprep.mubr.bf16.mxu0 0
      %668 = vmatmul.mubr.bf16.gmra.mrb[0].mxu0 %v528
      %v669 = vpop.f32.mrb[0].mxu0
      %v670 = vadd.f32 %v553, %v669
      %v671 = vpop.f32.mrb[0].mxu0
      %v672 = vpop.f32.mrb[0].mxu0
      %v673 = vadd.f32 %v553, %v672
      %v674 = vpop.f32.mrb[0].mxu0
      %675 = vmatprep.mubr.bf16.mxu0 0
      %676 = vmatmul.mubr.bf16.gmra.mrb[0].mxu0 %v529
      %v677 = vpop.f32.mrb[0].mxu0
      %v678 = vadd.f32 %v553, %v677
      %v679 = vpop.f32.mrb[0].mxu0
      %v680 = vpop.f32.mrb[0].mxu0
      %v681 = vadd.f32 %v553, %v680
      %v682 = vpop.f32.mrb[0].mxu0
      %683 = vmatprep.mubr.bf16.mxu0 0
      %684 = vmatmul.mubr.bf16.gmra.mrb[0].mxu0 %v530
      %v685 = vpop.f32.mrb[0].mxu0
      %v686 = vadd.f32 %v553, %v685
      %v687 = vpop.f32.mrb[0].mxu0
      %v688 = vpop.f32.mrb[0].mxu0
      %v689 = vadd.f32 %v553, %v688
      %v690 = vpop.f32.mrb[0].mxu0
      %691 = vmatprep.mubr.bf16.mxu0 0
      %692 = vmatmul.mubr.bf16.gmra.mrb[0].mxu0 %v531
      %v693 = vpop.f32.mrb[0].mxu0
      %v694 = vadd.f32 %v553, %v693
      %v695 = vpop.f32.mrb[0].mxu0
      %v696 = vpop.f32.mrb[0].mxu0
      %v697 = vadd.f32 %v553, %v696
      %v698 = vpop.f32.mrb[0].mxu0
      %699 = vdwg.mxu0
      %v700 = vtanh.pop %v638
      %v701 = vtanh.pop %v641
      %v702 = vtanh.pop %v646
      %v703 = vtanh.pop %v649
      %v704 = vtanh.pop %v654
      %v705 = vtanh.pop %v657
      %v706 = vtanh.pop %v662
      %v707 = vtanh.pop %v665
      %v708 = vtanh.pop %v670
      %v709 = vtanh.pop %v673
      %v710 = vtanh.pop %v678
      %v711 = vtanh.pop %v681
      %v712 = vtanh.pop %v686
      %v713 = vtanh.pop %v689
      %v714 = vtanh.pop %v694
      %v715 = vtanh.pop %v697
      %v716 = vpack.c.bf16 %v701, %v700
      %v717 = vpack.c.bf16 %v703, %v702
      %v718 = vpack.c.bf16 %v705, %v704
      %v719 = vpack.c.bf16 %v707, %v706
      %v720 = vpack.c.bf16 %v709, %v708
      %v721 = vpack.c.bf16 %v711, %v710
      %v722 = vpack.c.bf16 %v713, %v712
      %v723 = vpack.c.bf16 %v715, %v714
      %v724 = vld [vmem:[%s5] sm:$0xf]
      %v725 = vld [vmem:[%s5 + $0x4] sm:$0xf]
      %v726 = vld [vmem:[%s5 + $0x8] sm:$0xf]
      %v727 = vld [vmem:[%s5 + $0xc] sm:$0xf]
      %v728 = vld [vmem:[%s5 + $0x10] sm:$0xf]
      %v729 = vld [vmem:[%s5 + $0x14] sm:$0xf]
      %v730 = vld [vmem:[%s5 + $0x18] sm:$0xf]
      %v731 = vld [vmem:[%s5 + $0x1c] sm:$0xf]
      %v732 = vld [vmem:[%s5 + $0x20] sm:$0xf]
      %v733 = vld [vmem:[%s5 + $0x24] sm:$0xf]
      %v734 = vld [vmem:[%s5 + $0x28] sm:$0xf]
      %v735 = vld [vmem:[%s5 + $0x2c] sm:$0xf]
      %v736 = vld [vmem:[%s5 + $0x30] sm:$0xf]
      %v737 = vld [vmem:[%s5 + $0x34] sm:$0xf]
      %v738 = vld [vmem:[%s5 + $0x38] sm:$0xf]
      %v739 = vld [vmem:[%s5 + $0x3c] sm:$0xf]
      %v740 = vld [vmem:[%s6] sm:$0x1]
      %v742 = vlaneseq
      %v743 = vshrl.u32 %v742, 7
      %v744 = vsub.s32 0, %v743
      %v745 = vrot.slane %v740, %v744
      %v763 = vunpack.c.l.b16 %v724
      %v764 = vunpack.c.l.b16 %v725
      %v765 = vunpack.c.l.b16 %v726
      %v766 = vunpack.c.l.b16 %v727
      %v767 = vunpack.c.l.b16 %v728
      %v768 = vunpack.c.l.b16 %v729
      %v769 = vunpack.c.l.b16 %v730
      %v770 = vunpack.c.l.b16 %v731
      %v771 = vunpack.c.l.b16 %v732
      %v772 = vunpack.c.l.b16 %v733
      %v773 = vunpack.c.l.b16 %v734
      %v774 = vunpack.c.l.b16 %v735
      %v775 = vunpack.c.l.b16 %v736
      %v776 = vunpack.c.l.b16 %v737
      %v777 = vunpack.c.l.b16 %v738
      %v778 = vunpack.c.l.b16 %v739
      %v779 = vpack.c.b16 %v764, %v763
      %v780 = vpack.c.b16 %v766, %v765
      %v781 = vpack.c.b16 %v768, %v767
      %v782 = vpack.c.b16 %v770, %v769
      %v783 = vpack.c.b16 %v772, %v771
      %v784 = vpack.c.b16 %v774, %v773
      %v785 = vpack.c.b16 %v776, %v775
      %v786 = vpack.c.b16 %v778, %v777
      %795 = vmatprep.subr.bf16.mxu0 0
      %796 = vmatpush1.bf16.msra.mxu0 %v779
      %797 = vmatprep.subr.bf16.mxu0 0
      %798 = vmatpush1.bf16.msra.mxu0 %v780
      %799 = vmatprep.subr.bf16.mxu0 0
      %800 = vmatpush1.bf16.msra.mxu0 %v781
      %801 = vmatprep.subr.bf16.mxu0 0
      %802 = vmatpush1.bf16.msra.mxu0 %v782
      %803 = vmatprep.subr.bf16.mxu0 0
      %804 = vmatpush1.bf16.msra.mxu0 %v783
      %805 = vmatprep.subr.bf16.mxu0 0
      %806 = vmatpush1.bf16.msra.mxu0 %v784
      %807 = vmatprep.subr.bf16.mxu0 0
      %808 = vmatpush1.bf16.msra.mxu0 %v785
      %809 = vmatprep.subr.bf16.mxu0 0
      %810 = vmatpush1.bf16.msra.mxu0 %v786
      %811 = vmatprep.subr.bf16.mxu0 0
      %812 = vmatpush1.bf16.msra.mxu0 0
      %813 = vmatprep.subr.bf16.mxu0 0
      %814 = vmatpush1.bf16.msra.mxu0 0
      %815 = vmatprep.subr.bf16.mxu0 0
      %816 = vmatpush1.bf16.msra.mxu0 0
      %817 = vmatprep.subr.bf16.mxu0 0
      %818 = vmatpush1.bf16.msra.mxu0 0
      %819 = vmatprep.subr.bf16.mxu0 0
      %820 = vmatpush1.bf16.msra.mxu0 0
      %821 = vmatprep.subr.bf16.mxu0 0
      %822 = vmatpush1.bf16.msra.mxu0 0
      %823 = vmatprep.subr.bf16.mxu0 0
      %824 = vmatpush1.bf16.msra.mxu0 0
      %825 = vmatprep.subr.bf16.mxu0 0
      %826 = vmatpush1.bf16.msra.mxu0 0
      %827 = vmatprep.mubr.bf16.mxu0 0
      %828 = vmatmul.mubr.bf16.gmra.mrb[0].mxu0 %v716
      %v829 = vpop.f32.mrb[0].mxu0
      %v830 = vadd.f32 %v745, %v829
      %v831 = vpop.f32.mrb[0].mxu0
      %v832 = vpop.f32.mrb[0].mxu0
      %v833 = vadd.f32 %v745, %v832
      %v834 = vpop.f32.mrb[0].mxu0
      %835 = vmatprep.mubr.bf16.mxu0 0
      %836 = vmatmul.mubr.bf16.gmra.mrb[0].mxu0 %v717
      %v837 = vpop.f32.mrb[0].mxu0
      %v838 = vadd.f32 %v745, %v837
      %v839 = vpop.f32.mrb[0].mxu0
      %v840 = vpop.f32.mrb[0].mxu0
      %v841 = vadd.f32 %v745, %v840
      %v842 = vpop.f32.mrb[0].mxu0
      %843 = vmatprep.mubr.bf16.mxu0 0
      %844 = vmatmul.mubr.bf16.gmra.mrb[0].mxu0 %v718
      %v845 = vpop.f32.mrb[0].mxu0
      %v846 = vadd.f32 %v745, %v845
      %v847 = vpop.f32.mrb[0].mxu0
      %v848 = vpop.f32.mrb[0].mxu0
      %v849 = vadd.f32 %v745, %v848
      %v850 = vpop.f32.mrb[0].mxu0
      %851 = vmatprep.mubr.bf16.mxu0 0
      %852 = vmatmul.mubr.bf16.gmra.mrb[0].mxu0 %v719
      %v853 = vpop.f32.mrb[0].mxu0
      %v854 = vadd.f32 %v745, %v853
      %v855 = vpop.f32.mrb[0].mxu0
      %v856 = vpop.f32.mrb[0].mxu0
      %v857 = vadd.f32 %v745, %v856
      %v858 = vpop.f32.mrb[0].mxu0
      %859 = vmatprep.mubr.bf16.mxu0 0
      %860 = vmatmul.mubr.bf16.gmra.mrb[0].mxu0 %v720
      %v861 = vpop.f32.mrb[0].mxu0
      %v862 = vadd.f32 %v745, %v861
      %v863 = vpop.f32.mrb[0].mxu0
      %v864 = vpop.f32.mrb[0].mxu0
      %v865 = vadd.f32 %v745, %v864
      %v866 = vpop.f32.mrb[0].mxu0
      %867 = vmatprep.mubr.bf16.mxu0 0
      %868 = vmatmul.mubr.bf16.gmra.mrb[0].mxu0 %v721
      %v869 = vpop.f32.mrb[0].mxu0
      %v870 = vadd.f32 %v745, %v869
      %v871 = vpop.f32.mrb[0].mxu0
      %v872 = vpop.f32.mrb[0].mxu0
      %v873 = vadd.f32 %v745, %v872
      %v874 = vpop.f32.mrb[0].mxu0
      %875 = vmatprep.mubr.bf16.mxu0 0
      %876 = vmatmul.mubr.bf16.gmra.mrb[0].mxu0 %v722
      %v877 = vpop.f32.mrb[0].mxu0
      %v878 = vadd.f32 %v745, %v877
      %v879 = vpop.f32.mrb[0].mxu0
      %v880 = vpop.f32.mrb[0].mxu0
      %v881 = vadd.f32 %v745, %v880
      %v882 = vpop.f32.mrb[0].mxu0
      %883 = vmatprep.mubr.bf16.mxu0 0
      %884 = vmatmul.mubr.bf16.gmra.mrb[0].mxu0 %v723
      %v885 = vpop.f32.mrb[0].mxu0
      %v886 = vadd.f32 %v745, %v885
      %v887 = vpop.f32.mrb[0].mxu0
      %v888 = vpop.f32.mrb[0].mxu0
      %v889 = vadd.f32 %v745, %v888
      %v890 = vpop.f32.mrb[0].mxu0
      %891 = vdwg.mxu0
      %v892 = vtanh.pop %v830
      %v893 = vtanh.pop %v833
      %v894 = vtanh.pop %v838
      %v895 = vtanh.pop %v841
      %v896 = vtanh.pop %v846
      %v897 = vtanh.pop %v849
      %v898 = vtanh.pop %v854
      %v899 = vtanh.pop %v857
      %v900 = vtanh.pop %v862
      %v901 = vtanh.pop %v865
      %v902 = vtanh.pop %v870
      %v903 = vtanh.pop %v873
      %v904 = vtanh.pop %v878
      %v905 = vtanh.pop %v881
      %v906 = vtanh.pop %v886
      %v907 = vtanh.pop %v889
      %v908 = vpack.c.bf16 %v893, %v892
      %v909 = vpack.c.bf16 %v895, %v894
      %v910 = vpack.c.bf16 %v897, %v896
      %v911 = vpack.c.bf16 %v899, %v898
      %v912 = vpack.c.bf16 %v901, %v900
      %v913 = vpack.c.bf16 %v903, %v902
      %v914 = vpack.c.bf16 %v905, %v904
      %v915 = vpack.c.bf16 %v907, %v906
      %v916 = vunpack.c.l.bf16 %v908
      %v917 = vunpack.c.h.bf16 %v908
      %v918 = vunpack.c.l.bf16 %v909
      %v919 = vunpack.c.h.bf16 %v909
      %v920 = vunpack.c.l.bf16 %v910
      %v921 = vunpack.c.h.bf16 %v910
      %v922 = vunpack.c.l.bf16 %v911
      %v923 = vunpack.c.h.bf16 %v911
      %v924 = vunpack.c.l.bf16 %v912
      %v925 = vunpack.c.h.bf16 %v912
      %v926 = vunpack.c.l.bf16 %v913
      %v927 = vunpack.c.h.bf16 %v913
      %v928 = vunpack.c.l.bf16 %v914
      %v929 = vunpack.c.h.bf16 %v914
      %v930 = vunpack.c.l.bf16 %v915
      %v931 = vunpack.c.h.bf16 %v915
      %v932 = vld [vmem:[%s7] sm:$0x1]
      %v933 = vunpack.c.l.bf16 %v932
      %v934 = vlaneseq
      %v935 = vshrl.u32 %v934, 7
      %v936 = vsub.s32 0, %v935
      %v937 = vrot.slane %v933, %v936
      %v938 = vmul.f32 %v916, %v937
      %v939 = vmul.f32 %v917, %v937
      %v940 = vmul.f32 %v918, %v937
      %v941 = vmul.f32 %v919, %v937
      %v942 = vmul.f32 %v920, %v937
      %v943 = vmul.f32 %v921, %v937
      %v944 = vmul.f32 %v922, %v937
      %v945 = vmul.f32 %v923, %v937
      %v946 = vmul.f32 %v924, %v937
      %v947 = vmul.f32 %v925, %v937
      %v948 = vmul.f32 %v926, %v937
      %v949 = vmul.f32 %v927, %v937
      %v950 = vmul.f32 %v928, %v937
      %v951 = vmul.f32 %v929, %v937
      %v952 = vmul.f32 %v930, %v937
      %v953 = vmul.f32 %v931, %v937
      %954 = vadd.xlane.f32.xlu0 %v938
      %v955 = vpop.xlane.xlu0 %954
      %956 = vadd.xlane.f32.xlu0 %v939
      %v957 = vpop.xlane.xlu0 %956
      %958 = vadd.xlane.f32.xlu0 %v940
      %v959 = vpop.xlane.xlu0 %958
      %960 = vadd.xlane.f32.xlu0 %v941
      %v961 = vpop.xlane.xlu0 %960
      %962 = vadd.xlane.f32.xlu0 %v942
      %v963 = vpop.xlane.xlu0 %962
      %964 = vadd.xlane.f32.xlu0 %v943
      %v965 = vpop.xlane.xlu0 %964
      %966 = vadd.xlane.f32.xlu0 %v944
      %v967 = vpop.xlane.xlu0 %966
      %968 = vadd.xlane.f32.xlu0 %v945
      %v969 = vpop.xlane.xlu0 %968
      %970 = vadd.xlane.f32.xlu0 %v946
      %v971 = vpop.xlane.xlu0 %970
      %972 = vadd.xlane.f32.xlu0 %v947
      %v973 = vpop.xlane.xlu0 %972
      %974 = vadd.xlane.f32.xlu0 %v948
      %v975 = vpop.xlane.xlu0 %974
      %976 = vadd.xlane.f32.xlu0 %v949
      %v977 = vpop.xlane.xlu0 %976
      %978 = vadd.xlane.f32.xlu0 %v950
      %v979 = vpop.xlane.xlu0 %978
      %980 = vadd.xlane.f32.xlu0 %v951
      %v981 = vpop.xlane.xlu0 %980
      %982 = vadd.xlane.f32.xlu0 %v952
      %v983 = vpop.xlane.xlu0 %982
      %984 = vadd.xlane.f32.xlu0 %v953
      %v985 = vpop.xlane.xlu0 %984
      %v986 = vld [vmem:[#allocation2] sm:$0x1]
      %v988 = vlaneseq
      %v989 = vshrl.u32 %v988, 7
      %v990 = vsub.s32 0, %v989
      %v991 = vrot.slane %v986, %v990
      %v993 = vadd.f32 %v955, %v991
      %v994 = vadd.f32 %v957, %v991
      %v995 = vadd.f32 %v959, %v991
      %v996 = vadd.f32 %v961, %v991
      %v997 = vadd.f32 %v963, %v991
      %v998 = vadd.f32 %v965, %v991
      %v999 = vadd.f32 %v967, %v991
      %v1000 = vadd.f32 %v969, %v991
      %v1001 = vadd.f32 %v971, %v991
      %v1002 = vadd.f32 %v973, %v991
      %v1003 = vadd.f32 %v975, %v991
      %v1004 = vadd.f32 %v977, %v991
      %v1005 = vadd.f32 %v979, %v991
      %v1006 = vadd.f32 %v981, %v991
      %v1007 = vadd.f32 %v983, %v991
      %v1008 = vadd.f32 %v985, %v991
      %vm1009 = vcmask 7168
      %1010 = vst.msk [vmem:[%s336] sm:$0xff] %vm1009, %v993
      %1011 = vst.msk [vmem:[%s336 + $0x8] sm:$0xff] %vm1009, %v994
      %1012 = vst.msk [vmem:[%s336 + $0x10] sm:$0xff] %vm1009, %v995
      %1013 = vst.msk [vmem:[%s336 + $0x18] sm:$0xff] %vm1009, %v996
      %1014 = vst.msk [vmem:[%s336 + $0x20] sm:$0xff] %vm1009, %v997
      %1015 = vst.msk [vmem:[%s336 + $0x28] sm:$0xff] %vm1009, %v998
      %1016 = vst.msk [vmem:[%s336 + $0x30] sm:$0xff] %vm1009, %v999
      %1017 = vst.msk [vmem:[%s336 + $0x38] sm:$0xff] %vm1009, %v1000
      %1018 = vst.msk [vmem:[%s336 + $0x40] sm:$0xff] %vm1009, %v1001
      %1019 = vst.msk [vmem:[%s336 + $0x48] sm:$0xff] %vm1009, %v1002
      %1020 = vst.msk [vmem:[%s336 + $0x50] sm:$0xff] %vm1009, %v1003
      %1021 = vst.msk [vmem:[%s336 + $0x58] sm:$0xff] %vm1009, %v1004
      %1022 = vst.msk [vmem:[%s336 + $0x60] sm:$0xff] %vm1009, %v1005
      %1023 = vst.msk [vmem:[%s336 + $0x68] sm:$0xff] %vm1009, %v1006
      %1024 = vst.msk [vmem:[%s336 + $0x70] sm:$0xff] %vm1009, %v1007
      %1025 = vst.msk [vmem:[%s336 + $0x78] sm:$0xff] %vm1009, %v1008
      %s1026 = smul.u32 16, %s22
      %p1027 = scmp.lt.s32.totalorder %s1026, 31
      %s1028 = scalar_select %p1027, %s1026, 31
      %s1029 = smul.addr %s1028, 8
      %s1030 = scalar_lea.vmem %s9, %s1029
      // Predicated region
      $region57: #{nonlinear_network.1} parent=55 // pred_check
        %p1031 = pneg %p234
      $region58: #{nonlinear_network.1} parent=55 // pred_check_branch
        %1033 = sbr.rel (%p1031) target = $region60
      $region59: #{nonlinear_network.1} parent=55 // pred_region
        %s1034 = smul.u32 16, %s22
      $region60: #{nonlinear_network.1} parent=55 // pred_fallthru
        _
    $region56: #{nonlinear_network.1} parent=5 // pred_fallthru
      _
    %p1035 = scmp.le.s32.totalorder 2, %s17
    // Predicated region
    $region61: #{nonlinear_network.1} parent=5 // pred_check
      %p1036 = pneg %p1035
    $region62: #{nonlinear_network.1} parent=5 // pred_check_branch
      %1038 = sbr.rel (%p1036) target = $region64
    $region63: #{nonlinear_network.1} parent=5 // pred_region
      %s1039 = ssub.s32 %s17, 2
      // Predicated region
      $region65: #{nonlinear_network.1} parent=63 // pred_check
        %p1040 = pneg %p240
      $region66: #{nonlinear_network.1} parent=63 // pred_check_branch
        %1042 = sbr.rel (%p1040) target = $region68
      $region67: #{nonlinear_network.1} parent=63 // pred_region
        %s1043 = smul.u32 16, %s23
        %p1044 = scmp.lt.s32.totalorder %s1043, 31
        %s1045 = scalar_select %p1044, %s1043, 31
        %s1046 = smul.addr %s1045, 8
        %s1047 = scalar_lea.vmem %s9, %s1046
      $region68: #{nonlinear_network.1} parent=63 // pred_fallthru
        _
    $region64: #{nonlinear_network.1} parent=5 // pred_fallthru
      _
  $region6: #{nonlinear_network.1} parent=0 // loop_footer
    %s21 = sadd.s32 1, %s17
  $region7: #{nonlinear_network.1} parent=0 // loop_footer_branch
    %16 = sbr.rel target = $region3
  $region8: #{nonlinear_network.1} parent=0 // loop_exit
    _

</llo_original>
